<compile_context>
chip_gen: v5e
topology: v5e:2x2
jax: 0.10.0
libtpu: 0.0.40
codegen_flags: <defaults>
</compile_context>

<pallas_src>
import functools

import jax
import jax.numpy as jnp
from jax.experimental import pallas as pl
from jax.experimental.pallas import tpu as pltpu


# ------------------------------ helpers ------------------------------------

def _round_up(x, m):
    return ((x + m - 1) // m) * m


def _pick_tile(n_pad, pref=512):
    """Largest multiple of 128 that divides n_pad and is <= pref."""
    t = min(pref, n_pad)
    t -= t % 128
    while n_pad % t:
        t -= 128
    return t


# --------------------------- fused Pallas kernel ----------------------------

def _fused_gcn_kernel(a_ref, x0_ref, w_ref, b_ref, o_ref,
                      x_scr, xw_scr, acc_ref,
                      *, num_layers, n_k, tk, tm, negative_slope):
    """Grid = (layer, row_tile, k_tile).  Activation X lives in x_scr across layers."""
    l = pl.program_id(0)
    r = pl.program_id(1)
    k = pl.program_id(2)

    # Layer-0 bootstrap: stage the (padded, bf16) input features into the resident
    # activation scratch exactly once.
    @pl.when((l == 0) & (r == 0) & (k == 0))
    def _():
        x_scr[...] = x0_ref[...]

    # Once per layer: dense feature transform XW_l = X_l @ W_l (bf16 x bf16 -> f32 acc).
    # After this, X_l is no longer needed, so the same x_scr buffer can be overwritten
    # in place with X_{l+1} row tiles below.
    @pl.when((r == 0) & (k == 0))
    def _():
        xw_scr[...] = jnp.dot(
            x_scr[...], w_ref[...], preferred_element_type=jnp.float32
        ).astype(xw_scr.dtype)

    # Bias folded into the accumulator init (no per-step broadcast add).
    @pl.when(k == 0)
    def _():
        acc_ref[...] = jnp.broadcast_to(b_ref[...], acc_ref.shape)

    # Row-tile x K-tile contribution of A_norm @ XW_l  (bf16 MXU, f32 accumulate).
    k0 = pl.multiple_of(k * tk, tk)
    acc_ref[...] += jnp.dot(a_ref[...], xw_scr[pl.ds(k0, tk), :],
                            preferred_element_type=jnp.float32)

    is_last_k = k == n_k - 1
    is_last_layer = l == num_layers - 1

    # Epilogue for this row tile: leaky_relu(0.2) on hidden layers, identity on the last
    # (slope = 1.0).  Kept in f32.  dropout(p=0.3, training=False) -> identity.
    @pl.when(is_last_k)
    def _():
        res = acc_ref[...]
        slope = jnp.where(is_last_layer, jnp.float32(1.0), jnp.float32(negative_slope))
        acc_ref[...] = jnp.where(res >= 0.0, res, slope * res)

    # Hidden layers: write the activated tile back into the resident activation scratch.
    @pl.when(is_last_k & jnp.logical_not(is_last_layer))
    def _():
        r0 = pl.multiple_of(r * tm, tm)
        x_scr[pl.ds(r0, tm), :] = acc_ref[...].astype(x_scr.dtype)

    # Last layer: lane-dense f32 store of the final output tile.
    @pl.when(is_last_k & is_last_layer)
    def _():
        o_ref[...] = acc_ref[...].astype(o_ref.dtype)


@jax.jit
def gcn_forward_fused(a_pad, x_pad, w_all, b_all):
    """One pallas_call for the whole GCN stack.

    a_pad : (n_pad, n_pad) bf16   normalized adjacency, zero-padded
    x_pad : (n_pad, f_pad) bf16   input features, zero-padded
    w_all : (L, f_pad, f_pad) bf16
    b_all : (L, 1, f_pad) f32
    returns (n_pad, f_pad) f32
    """
    n_pad = a_pad.shape[0]
    f_pad = w_all.shape[-1]
    num_layers = w_all.shape[0]

    tm = _pick_tile(n_pad, 512)          # row tile of A / output
    tk = _pick_tile(n_pad, 512)          # reduction tile of A
    n_r = n_pad // tm
    n_k = n_pad // tk

    kernel = functools.partial(
        _fused_gcn_kernel,
        num_layers=num_layers, n_k=n_k, tk=tk, tm=tm, negative_slope=0.2,
    )

    return pl.pallas_call(
        kernel,
        out_shape=jax.ShapeDtypeStruct((n_pad, f_pad), jnp.float32),
        grid_spec=pltpu.PrefetchScalarGridSpec(
            num_scalar_prefetch=0,
            grid=(num_layers, n_r, n_k),
            in_specs=[
                # A_norm row/k tile (re-fetched per layer only when it changes; for small
                # graphs a single tile covers A and it stays resident across all layers).
                pl.BlockSpec((tm, tk), lambda l, r, k: (r, k)),
                # Input features: constant block index -> fetched once, kept resident.
                pl.BlockSpec((n_pad, f_pad), lambda l, r, k: (0, 0)),
                # Per-layer weight / bias (leading layer dim squeezed).
                pl.BlockSpec((None, f_pad, f_pad), lambda l, r, k: (l, 0, 0)),
                pl.BlockSpec((None, 1, f_pad), lambda l, r, k: (l, 0, 0)),
            ],
            out_specs=pl.BlockSpec((tm, f_pad), lambda l, r, k: (r, 0)),
            scratch_shapes=[
                pltpu.VMEM((n_pad, f_pad), jnp.bfloat16),   # resident activation X
                pltpu.VMEM((n_pad, f_pad), jnp.bfloat16),   # XW_l for the current layer
                pltpu.VMEM((tm, f_pad), jnp.float32),       # f32 accumulator (bias-init)
            ],
        ),
        compiler_params=pltpu.CompilerParams(
            # Layer axis and row/k axes all carry dependencies through the scratch
            # buffers (cross-layer activation, once-per-layer XW), so they must stay
            # sequential on one core.
            dimension_semantics=("arbitrary", "arbitrary", "arbitrary"),
            vmem_limit_bytes=48 * 1024 * 1024,   # headroom, fits v7x 64 MiB physical
        ),
    )(a_pad, x_pad, w_all, b_all)


# --------------------------- host-side preparation ---------------------------

def normalized_adjacency(edge_index, num_nodes):
    """Dense D^-1/2 (A + I) D^-1/2, matching torch_geometric gcn_norm defaults."""
    src = edge_index[0]
    dst = edge_index[1]
    a = jnp.zeros((num_nodes, num_nodes), jnp.float32)
    # messages flow src -> dst  =>  out[dst] += xw[src]  =>  A[dst, src] = 1
    a = a.at[dst, src].add(1.0)
    a = a + jnp.eye(num_nodes, dtype=jnp.float32)
    deg = jnp.sum(a, axis=1)
    dinv = jnp.where(deg > 0, 1.0 / jnp.sqrt(deg), 0.0)
    return dinv[:, None] * a * dinv[None, :]


def init_params(key, input_dim, hidden_dim, output_dim, num_layers):
    params = {}
    k_enc, key = jax.random.split(key)
    # Encoder exists in the module but its output is dead code for model_type=0;
    # parameters are initialized for parity but never used (DCE'd from the forward).
    params["enc_w"] = (jax.random.normal(k_enc, (input_dim, hidden_dim), jnp.float32)
                       * (1.0 / jnp.sqrt(input_dim)))
    params["enc_b"] = jnp.zeros((hidden_dim,), jnp.float32)
    convs = []
    for i in range(num_layers):
        fin = hidden_dim if i > 0 else input_dim
        fout = hidden_dim if i < num_layers - 1 else output_dim
        kw, key = jax.random.split(key)
        w = jax.random.normal(kw, (fin, fout), jnp.float32) * (1.0 / jnp.sqrt(fin))
        b = jnp.zeros((fout,), jnp.float32)
        convs.append((w, b))
    params["convs"] = convs
    return params


def prepare_packed(params, x, edge_index, input_dim, hidden_dim, output_dim):
    """Hoisted one-time preprocessing: adjacency build, padding, bf16 packing."""
    num_nodes = x.shape[0]
    n_pad = _round_up(num_nodes, 128)
    f_pad = _round_up(max(input_dim, hidden_dim, output_dim), 128)

    a = normalized_adjacency(edge_index, num_nodes)
    a_pad = jnp.zeros((n_pad, n_pad), jnp.float32).at[:num_nodes, :num_nodes].set(a)
    a_pad = a_pad.astype(jnp.bfloat16)

    x_pad = jnp.zeros((n_pad, f_pad), jnp.float32).at[:num_nodes, :input_dim].set(x)
    x_pad = x_pad.astype(jnp.bfloat16)

    w_list, b_list = [], []
    for (w, b) in params["convs"]:
        fin, fout = w.shape
        w_list.append(jnp.zeros((f_pad, f_pad), jnp.float32).at[:fin, :fout].set(w))
        b_list.append(jnp.zeros((f_pad,), jnp.float32).at[:fout].set(b))
    w_all = jnp.stack(w_list).astype(jnp.bfloat16)           # (L, f_pad, f_pad)
    b_all = jnp.stack(b_list)[:, None, :].astype(jnp.float32)  # (L, 1, f_pad)
    return a_pad, x_pad, w_all, b_all


def gcn_forward(params, x, edge_index, input_dim, hidden_dim, output_dim):
    """GCN.forward with model_type=0 (eval mode). Returns (x, reg)."""
    num_nodes = x.shape[0]
    a_pad, x_pad, w_all, b_all = prepare_packed(
        params, x, edge_index, input_dim, hidden_dim, output_dim)
    out_pad = gcn_forward_fused(a_pad, x_pad, w_all, b_all)
    out = out_pad[:num_nodes, :output_dim]
    reg = jnp.float32(0.0)
    return out, reg


# ----------------------------------- main -----------------------------------

if __name__ == "__main__":
    key = jax.random.PRNGKey(0)

    num_nodes = 16
    input_dim = 8
    hidden_dim = 32
    output_dim = 16
    num_layers = 3
    num_edges = 40
    # D, L, K only parameterize the (unused) Quantization modules for model_type=0.

    k_x, k_src, k_dst, k_p = jax.random.split(key, 4)
    x = jax.random.normal(k_x, (num_nodes, input_dim), jnp.float32)
    src = jax.random.randint(k_src, (num_edges,), 0, num_nodes)
    dst = jax.random.randint(k_dst, (num_edges,), 0, num_nodes)
    dst = jnp.where(src == dst, (dst + 1) % num_nodes, dst)   # avoid explicit self-loops
    edge_index = jnp.stack([src, dst], axis=0)

    params = init_params(k_p, input_dim, hidden_dim, output_dim, num_layers)

    out, reg = gcn_forward(params, x, edge_index, input_dim, hidden_dim, output_dim)
    out = jax.block_until_ready(out)
    reg = jax.block_until_ready(reg)

    assert out.shape == (num_nodes, output_dim), out.shape
    assert out.dtype == jnp.float32
    assert bool(jnp.all(jnp.isfinite(out)))
    print("KERNEL_OK")
</pallas_src>

<mosaic_0001>
module attributes {stable_mosaic.version = 11 : i64} {
  func.func @_fused_gcn_kernel(%arg0: i32, %arg1: i32, %arg2: i32, %arg3: memref<128x128xbf16, #tpu.memory_space<vmem>>, %arg4: memref<128x128xbf16, #tpu.memory_space<vmem>>, %arg5: memref<1x128x128xbf16, #tpu.memory_space<vmem>>, %arg6: memref<1x1x128xf32, #tpu.memory_space<vmem>>, %arg7: memref<128x128xf32, #tpu.memory_space<vmem>>, %arg8: memref<128x128xbf16, #tpu.memory_space<vmem>>, %arg9: memref<128x128xbf16, #tpu.memory_space<vmem>>, %arg10: memref<128x128xf32, #tpu.memory_space<vmem>>) attributes {dimension_semantics = [#tpu.dimension_semantics<arbitrary>, #tpu.dimension_semantics<arbitrary>, #tpu.dimension_semantics<arbitrary>], iteration_bounds = array<i64: 3, 1, 1>, scalar_prefetch = 0 : i64, scratch_operands = 3 : i64, tpu.core_type = #tpu.core_type<tc>, window_params = [{transform_indices = @transform_0, window_bounds = array<i64: 128, 128>}, {pipeline_mode = #tpu.pipeline_mode<synchronous>, transform_indices = @transform_1, window_bounds = array<i64: 128, 128>}, {transform_indices = @transform_2, window_bounds = array<i64: 1, 128, 128>}, {transform_indices = @transform_3, window_bounds = array<i64: 1, 1, 128>}, {transform_indices = @transform_4, window_bounds = array<i64: 128, 128>}]} {
    %c0_i32 = arith.constant 0 : i32
    %0 = arith.cmpi eq, %arg0, %c0_i32 : i32
    %c0_i32_0 = arith.constant 0 : i32
    %1 = arith.cmpi eq, %arg1, %c0_i32_0 : i32
    %2 = arith.andi %0, %1 : i1
    %c0_i32_1 = arith.constant 0 : i32
    %3 = arith.cmpi eq, %arg2, %c0_i32_1 : i32
    %4 = arith.andi %2, %3 : i1
    %5 = arith.extui %4 : i1 to i32
    %c0_i32_2 = arith.constant 0 : i32
    %6 = arith.cmpi ne, %5, %c0_i32_2 : i32
    scf.if %6 {
      %c0_18 = arith.constant 0 : index
      %c0_19 = arith.constant 0 : index
      %35 = vector.load %arg4[%c0_18, %c0_19] : memref<128x128xbf16, #tpu.memory_space<vmem>>, vector<128x128xbf16>
      %c0_20 = arith.constant 0 : index
      %c0_21 = arith.constant 0 : index
      %36 = vector.load %arg8[%c0_20, %c0_21] : memref<128x128xbf16, #tpu.memory_space<vmem>>, vector<128x128xbf16>
      tpu.vector_store %arg8[%c0_20, %c0_21], %35 {strides = array<i32>} : memref<128x128xbf16, #tpu.memory_space<vmem>>, vector<128x128xbf16>,
    } else {
    }
    %c0_i32_3 = arith.constant 0 : i32
    %7 = arith.cmpi eq, %arg1, %c0_i32_3 : i32
    %c0_i32_4 = arith.constant 0 : i32
    %8 = arith.cmpi eq, %arg2, %c0_i32_4 : i32
    %9 = arith.andi %7, %8 : i1
    %10 = arith.extui %9 : i1 to i32
    %c0_i32_5 = arith.constant 0 : i32
    %11 = arith.cmpi ne, %10, %c0_i32_5 : i32
    scf.if %11 {
      %c0_18 = arith.constant 0 : index
      %c0_19 = arith.constant 0 : index
      %35 = vector.load %arg8[%c0_18, %c0_19] : memref<128x128xbf16, #tpu.memory_space<vmem>>, vector<128x128xbf16>
      %c0_20 = arith.constant 0 : index
      %c0_21 = arith.constant 0 : index
      %c0_22 = arith.constant 0 : index
      %36 = vector.load %arg5[%c0_20, %c0_21, %c0_22] : memref<1x128x128xbf16, #tpu.memory_space<vmem>>, vector<1x128x128xbf16>
      %37 = vector.shape_cast %36 : vector<1x128x128xbf16> to vector<128x128xbf16>
      %cst_23 = arith.constant dense<0.000000e+00> : vector<128x128xf32>
      %38 = tpu.matmul %35, %37, %cst_23 {dimension_numbers = #tpu.dot_dimension_numbers<[1], [0], [0], [1], [0, 0, 1, 1], [], []>} : vector<128x128xbf16>, vector<128x128xbf16>, vector<128x128xf32> -> vector<128x128xf32>
      %39 = arith.truncf %38 : vector<128x128xf32> to vector<128x128xbf16>
      %c0_24 = arith.constant 0 : index
      %c0_25 = arith.constant 0 : index
      %40 = vector.load %arg9[%c0_24, %c0_25] : memref<128x128xbf16, #tpu.memory_space<vmem>>, vector<128x128xbf16>
      tpu.vector_store %arg9[%c0_24, %c0_25], %39 {strides = array<i32>} : memref<128x128xbf16, #tpu.memory_space<vmem>>, vector<128x128xbf16>,
    } else {
    }
    %c0_i32_6 = arith.constant 0 : i32
    %12 = arith.cmpi eq, %arg2, %c0_i32_6 : i32
    %13 = arith.extui %12 : i1 to i32
    %c0_i32_7 = arith.constant 0 : i32
    %14 = arith.cmpi ne, %13, %c0_i32_7 : i32
    scf.if %14 {
      %c0_18 = arith.constant 0 : index
      %c0_19 = arith.constant 0 : index
      %c0_20 = arith.constant 0 : index
      %35 = vector.load %arg6[%c0_18, %c0_19, %c0_20] : memref<1x1x128xf32, #tpu.memory_space<vmem>>, vector<1x1x128xf32>
      %36 = vector.shape_cast %35 : vector<1x1x128xf32> to vector<1x128xf32>
      %37 = vector.shape_cast %36 : vector<1x128xf32> to vector<1x128xf32>
      %38 = vector.broadcast %37 : vector<1x128xf32> to vector<128x128xf32>
      %c0_21 = arith.constant 0 : index
      %c0_22 = arith.constant 0 : index
      %39 = vector.load %arg10[%c0_21, %c0_22] : memref<128x128xf32, #tpu.memory_space<vmem>>, vector<128x128xf32>
      tpu.vector_store %arg10[%c0_21, %c0_22], %38 {strides = array<i32>} : memref<128x128xf32, #tpu.memory_space<vmem>>, vector<128x128xf32>,
    } else {
    }
    %c128_i32 = arith.constant 128 : i32
    %15 = arith.muli %arg2, %c128_i32 : i32
    %16 = tpu.assume_multiple %15, 128 : i32
    %c0 = arith.constant 0 : index
    %c0_8 = arith.constant 0 : index
    %17 = vector.load %arg10[%c0, %c0_8] : memref<128x128xf32, #tpu.memory_space<vmem>>, vector<128x128xf32>
    %c0_9 = arith.constant 0 : index
    %c0_10 = arith.constant 0 : index
    %18 = vector.load %arg3[%c0_9, %c0_10] : memref<128x128xbf16, #tpu.memory_space<vmem>>, vector<128x128xbf16>
    %19 = arith.index_cast %16 : i32 to index
    %c0_11 = arith.constant 0 : index
    %20 = vector.load %arg9[%19, %c0_11] : memref<128x128xbf16, #tpu.memory_space<vmem>>, vector<128x128xbf16>
    %cst = arith.constant dense<0.000000e+00> : vector<128x128xf32>
    %21 = tpu.matmul %18, %20, %cst {dimension_numbers = #tpu.dot_dimension_numbers<[1], [0], [0], [1], [0, 0, 1, 1], [], []>} : vector<128x128xbf16>, vector<128x128xbf16>, vector<128x128xf32> -> vector<128x128xf32>
    %22 = arith.addf %17, %21 : vector<128x128xf32>
    %c0_12 = arith.constant 0 : index
    %c0_13 = arith.constant 0 : index
    %23 = vector.load %arg10[%c0_12, %c0_13] : memref<128x128xf32, #tpu.memory_space<vmem>>, vector<128x128xf32>
    tpu.vector_store %arg10[%c0_12, %c0_13], %22 {strides = array<i32>} : memref<128x128xf32, #tpu.memory_space<vmem>>, vector<128x128xf32>,
    %c0_i32_14 = arith.constant 0 : i32
    %24 = arith.cmpi eq, %arg2, %c0_i32_14 : i32
    %c2_i32 = arith.constant 2 : i32
    %25 = arith.cmpi eq, %arg0, %c2_i32 : i32
    %26 = arith.extui %24 : i1 to i32
    %c0_i32_15 = arith.constant 0 : i32
    %27 = arith.cmpi ne, %26, %c0_i32_15 : i32
    scf.if %27 {
      %c0_18 = arith.constant 0 : index
      %c0_19 = arith.constant 0 : index
      %35 = vector.load %arg10[%c0_18, %c0_19] : memref<128x128xf32, #tpu.memory_space<vmem>>, vector<128x128xf32>
      %cst_20 = arith.constant 1.000000e+00 : f32
      %cst_21 = arith.constant 2.000000e-01 : f32
      %36 = arith.select %25, %cst_20, %cst_21 : f32
      %cst_22 = arith.constant 0.000000e+00 : f32
      %37 = vector.broadcast %cst_22 : f32 to vector<128x128xf32>
      %38 = arith.cmpf oge, %35, %37 : vector<128x128xf32>
      %39 = vector.broadcast %36 : f32 to vector<128x128xf32>
      %40 = arith.mulf %39, %35 : vector<128x128xf32>
      %41 = arith.select %38, %35, %40 : vector<128x128xi1>, vector<128x128xf32>
      %c0_23 = arith.constant 0 : index
      %c0_24 = arith.constant 0 : index
      %42 = vector.load %arg10[%c0_23, %c0_24] : memref<128x128xf32, #tpu.memory_space<vmem>>, vector<128x128xf32>
      tpu.vector_store %arg10[%c0_23, %c0_24], %41 {strides = array<i32>} : memref<128x128xf32, #tpu.memory_space<vmem>>, vector<128x128xf32>,
    } else {
    }
    %true = arith.constant true
    %28 = arith.xori %25, %true : i1
    %29 = arith.andi %24, %28 : i1
    %30 = arith.extui %29 : i1 to i32
    %c0_i32_16 = arith.constant 0 : i32
    %31 = arith.cmpi ne, %30, %c0_i32_16 : i32
    scf.if %31 {
      %c128_i32_18 = arith.constant 128 : i32
      %35 = arith.muli %arg1, %c128_i32_18 : i32
      %36 = tpu.assume_multiple %35, 128 : i32
      %c0_19 = arith.constant 0 : index
      %c0_20 = arith.constant 0 : index
      %37 = vector.load %arg10[%c0_19, %c0_20] : memref<128x128xf32, #tpu.memory_space<vmem>>, vector<128x128xf32>
      %38 = arith.truncf %37 : vector<128x128xf32> to vector<128x128xbf16>
      %39 = arith.index_cast %36 : i32 to index
      %c0_21 = arith.constant 0 : index
      %40 = vector.load %arg8[%39, %c0_21] : memref<128x128xbf16, #tpu.memory_space<vmem>>, vector<128x128xbf16>
      tpu.vector_store %arg8[%39, %c0_21], %38 {strides = array<i32>} : memref<128x128xbf16, #tpu.memory_space<vmem>>, vector<128x128xbf16>,
    } else {
    }
    %32 = arith.andi %24, %25 : i1
    %33 = arith.extui %32 : i1 to i32
    %c0_i32_17 = arith.constant 0 : i32
    %34 = arith.cmpi ne, %33, %c0_i32_17 : i32
    scf.if %34 {
      %c0_18 = arith.constant 0 : index
      %c0_19 = arith.constant 0 : index
      %35 = vector.load %arg10[%c0_18, %c0_19] : memref<128x128xf32, #tpu.memory_space<vmem>>, vector<128x128xf32>
      %c0_20 = arith.constant 0 : index
      %c0_21 = arith.constant 0 : index
      %36 = vector.load %arg7[%c0_20, %c0_21] : memref<128x128xf32, #tpu.memory_space<vmem>>, vector<128x128xf32>
      tpu.vector_store %arg7[%c0_20, %c0_21], %35 {strides = array<i32>} : memref<128x128xf32, #tpu.memory_space<vmem>>, vector<128x128xf32>,
    } else {
    }
    return
  }
  func.func @transform_0(%arg0: i32, %arg1: i32, %arg2: i32) -> (i32, i32) {
    %c0_i32 = arith.constant 0 : i32
    return %arg1, %arg2 : i32, i32
  }
  func.func @transform_1(%arg0: i32, %arg1: i32, %arg2: i32) -> (i32, i32) {
    %c0_i32 = arith.constant 0 : i32
    %c0_i32_0 = arith.constant 0 : i32
    %c0_i32_1 = arith.constant 0 : i32
    return %c0_i32, %c0_i32_0 : i32, i32
  }
  func.func @transform_2(%arg0: i32, %arg1: i32, %arg2: i32) -> (i32, i32, i32) {
    %c0_i32 = arith.constant 0 : i32
    %c0_i32_0 = arith.constant 0 : i32
    %c0_i32_1 = arith.constant 0 : i32
    return %arg0, %c0_i32, %c0_i32_0 : i32, i32, i32
  }
  func.func @transform_3(%arg0: i32, %arg1: i32, %arg2: i32) -> (i32, i32, i32) {
    %c0_i32 = arith.constant 0 : i32
    %c0_i32_0 = arith.constant 0 : i32
    %c0_i32_1 = arith.constant 0 : i32
    return %arg0, %c0_i32, %c0_i32_0 : i32, i32, i32
  }
  func.func @transform_4(%arg0: i32, %arg1: i32, %arg2: i32) -> (i32, i32) {
    %c0_i32 = arith.constant 0 : i32
    %c0_i32_0 = arith.constant 0 : i32
    return %arg1, %c0_i32 : i32, i32
  }
}

</mosaic_0001>

<llo_original>
// kernel: gcn_forward_fused.1
$region0: #{gcn_forward_fused.1}
  #allocation0 [shape = 'u32[]', space=smem, size = 0x4, offset = 0x4, fixed_abs, tag = 'smem constant byte address 0x4 - core index']
  #allocation1 [shape = 'u32[72,128]{1,0:T(1,128)}', space=vmem, size = 0x9000, scoped, tag = 'internal scratch']
  #allocation2 [shape = 'bf16[128,128]{1,0:T(8,128)(2,1)}', space=vmem, size = 0x8000, scoped, tag = 'scratch operand']
  #allocation3 [shape = 'bf16[128,128]{1,0:T(8,128)(2,1)}', space=vmem, size = 0x8000, scoped, tag = 'scratch operand']
  #allocation4 [shape = 'f32[128,128]{1,0:T(8,128)}', space=vmem, size = 0x10000, scoped, tag = 'scratch operand']
  %s0 = inlined_call_operand.hbm [shape: bf16[128,128], index: 0, kind: input, shape index: {}]
  %s1 = inlined_call_operand.hbm [shape: bf16[128,128], index: 1, kind: input, shape index: {}]
  %s2 = inlined_call_operand.hbm [shape: bf16[3,128,128], index: 2, kind: input, shape index: {}]
  %s3 = inlined_call_operand.hbm [shape: f32[3,1,128], index: 3, kind: input, shape index: {}]
  %s4 = inlined_call_operand.hbm [shape: f32[128,128], index: 4, kind: output, shape index: {}]
  %s5 = sld [smem:[#allocation0]]
  $region89: #{gcn_forward_fused.1} parent=0
    _
  %s7 = ssub.s32 1, %s5
  %s8 = scalar_select 0, %s7, %s5
  $region1: #{gcn_forward_fused.1} parent=0
    #allocation5 [shape = 'u8[32768]{0}', space=vmem, size = 0x8000, scoped, tag = 'input window, operand 0, single buffered']
    #allocation6 [shape = 's32[2]{0}', space=sflag, size = 0x8, scoped, tag = 'scoped memory for gcn_forward_fused.1']
    #allocation7 [shape = 's32[2]{0}', space=sflag, size = 0x8, scoped, tag = 'scoped memory for gcn_forward_fused.1']
    #allocation8 [shape = 'u8[32768]{0}', space=vmem, size = 0x8000, scoped, tag = 'input window, operand 1, single buffered']
    #allocation9 [shape = 's32[1]{0}', space=sflag, size = 0x4, scoped, tag = 'scoped memory for gcn_forward_fused.1']
    #allocation10 [shape = 'u8[65536]{0}', space=vmem, size = 0x10000, scoped, tag = 'input window, operand 2']
    #allocation11 [shape = 'u8[1024]{0}', space=vmem, size = 0x400, scoped, tag = 'input window, operand 3']
    #allocation12 [shape = 'u8[65536]{0}', space=vmem, size = 0x10000, scoped, tag = 'output window, operand 0, single buffered']
    %9 = vsyncpa [#allocation6], 0
    %10 = vsyncpa [#allocation9], 0
    %11 = vsyncpa [#allocation7], 0
    loop: start=0, step=1, limit=5
    $region2: #{gcn_forward_fused.1} parent=1 // loop_pre_header
      _
    $region3: #{gcn_forward_fused.1} parent=1 // loop_header
      %s13 = sphi 0, %s17
      %p14 = scmp.ge.s32.totalorder %s13, 5
      %s20 = sphi 0, %s39
      %s21 = sphi 0, %s35
      %s22 = sphi 0, %s31
      %s23 = sphi 0, %s20
      %s24 = sphi 0, %s21
      %s25 = sphi 0, %s22
      %s26 = sphi 0, %s23
      %s27 = sphi 0, %s24
      %s28 = sphi 0, %s25
      %s44 = sphi 0, %s46
      %s47 = sphi 0, %s44
      %s48 = sphi 0, %s47
      %s64 = sphi 0, %s48
      %s68 = sphi 0, %s68
      %s70 = sphi 0, %s68
      %s71 = sphi 0, %s70
      %s85 = sphi 0, %s71
      %s91 = sphi 0, %s93
      %s94 = sphi 0, %s91
      %s95 = sphi 0, %s94
      %s111 = sphi 0, %s95
      %s117 = sphi 0, %s119
      %s120 = sphi 0, %s117
      %s121 = sphi 0, %s120
      %s137 = sphi 0, %s121
      %s143 = sphi 0, %s145
      %s146 = sphi 0, %s143
      %s147 = sphi 0, %s146
      %s163 = sphi 0, %s147
    $region4: #{gcn_forward_fused.1} parent=1 // loop_header_branch
      %16 = sbr.rel (%p14) target = $region8
    $region5: #{gcn_forward_fused.1} parent=1 // loop_body
      %s18 = ssub.s32 %s13, 1
      %s19 = ssub.s32 %s13, 2
      %s29 = sadd.s32 1, %s22
      %p30 = scmp.ge.s32.totalorder %s29, 1
      %s31 = scalar_select %p30, 0, %s29
      %s32 = sadd.s32 1, %s21
      %s33 = scalar_select %p30, %s32, %s21
      %p34 = scmp.ge.s32.totalorder %s33, 1
      %s35 = scalar_select %p34, 0, %s33
      %s36 = sadd.s32 1, %s20
      %s37 = scalar_select %p34, %s36, %s20
      %p38 = scmp.ge.s32.totalorder %s37, 3
      %s39 = scalar_select %p38, 0, %s37
      %s40 = ssub.s32 %s21, %s35
      %s41 = ssub.s32 %s22, %s31
      %s42 = sor.u32 %s40, %s41
      %p43 = scmp.eq.s32.totalorder %s42, 0
      %s45 = sadd.s32 %s44, 1
      %s46 = scalar_select %p43, %s44, %s45
      %p49 = pneg %p43
      %p50 = scmp.eq.s32.totalorder %s13, 2
      %p51 = por %p49, %p50
      %p52 = scmp.ne.s32.totalorder %s44, %s47
      %p53 = scmp.eq.s32.totalorder %s13, 0
      %p54 = por %p52, %p53
      %p55 = scmp.ne.s32.totalorder %s44, %s47
      %p56 = scmp.eq.s32.totalorder %s18, 2
      %p57 = por %p55, %p56
      %p58 = scmp.ne.s32.totalorder %s47, %s48
      %p59 = scmp.eq.s32.totalorder %s18, 0
      %p60 = por %p58, %p59
      %p61 = scmp.ne.s32.totalorder %s47, %s48
      %p62 = scmp.eq.s32.totalorder %s19, 2
      %p63 = por %p61, %p62
      %p65 = scmp.ne.s32.totalorder %s48, %s64
      %p66 = scmp.eq.s32.totalorder %s19, 0
      %p67 = por %p65, %p66
      %s69 = sadd.s32 %s68, 1
      %p72 = scmp.eq.s32.totalorder %s13, 2
      %p73 = scmp.ne.s32.totalorder %s68, %s70
      %p74 = scmp.eq.s32.totalorder %s13, 0
      %p75 = por %p73, %p74
      %p76 = scmp.ne.s32.totalorder %s68, %s70
      %p77 = scmp.eq.s32.totalorder %s18, 2
      %p78 = por %p76, %p77
      %p79 = scmp.ne.s32.totalorder %s70, %s71
      %p80 = scmp.eq.s32.totalorder %s18, 0
      %p81 = por %p79, %p80
      %p82 = scmp.ne.s32.totalorder %s70, %s71
      %p83 = scmp.eq.s32.totalorder %s19, 2
      %p84 = por %p82, %p83
      %p86 = scmp.ne.s32.totalorder %s71, %s85
      %p87 = scmp.eq.s32.totalorder %s19, 0
      %p88 = por %p86, %p87
      %s89 = ssub.s32 %s20, %s39
      %p90 = scmp.eq.s32.totalorder %s89, 0
      %s92 = sadd.s32 %s91, 1
      %s93 = scalar_select %p90, %s91, %s92
      %p96 = pneg %p90
      %p97 = scmp.eq.s32.totalorder %s13, 2
      %p98 = por %p96, %p97
      %p99 = scmp.ne.s32.totalorder %s91, %s94
      %p100 = scmp.eq.s32.totalorder %s13, 0
      %p101 = por %p99, %p100
      %p102 = scmp.ne.s32.totalorder %s91, %s94
      %p103 = scmp.eq.s32.totalorder %s18, 2
      %p104 = por %p102, %p103
      %p105 = scmp.ne.s32.totalorder %s94, %s95
      %p106 = scmp.eq.s32.totalorder %s18, 0
      %p107 = por %p105, %p106
      %p108 = scmp.ne.s32.totalorder %s94, %s95
      %p109 = scmp.eq.s32.totalorder %s19, 2
      %p110 = por %p108, %p109
      %p112 = scmp.ne.s32.totalorder %s95, %s111
      %p113 = scmp.eq.s32.totalorder %s19, 0
      %p114 = por %p112, %p113
      %s115 = ssub.s32 %s20, %s39
      %p116 = scmp.eq.s32.totalorder %s115, 0
      %s118 = sadd.s32 %s117, 1
      %s119 = scalar_select %p116, %s117, %s118
      %p122 = pneg %p116
      %p123 = scmp.eq.s32.totalorder %s13, 2
      %p124 = por %p122, %p123
      %p125 = scmp.ne.s32.totalorder %s117, %s120
      %p126 = scmp.eq.s32.totalorder %s13, 0
      %p127 = por %p125, %p126
      %p128 = scmp.ne.s32.totalorder %s117, %s120
      %p129 = scmp.eq.s32.totalorder %s18, 2
      %p130 = por %p128, %p129
      %p131 = scmp.ne.s32.totalorder %s120, %s121
      %p132 = scmp.eq.s32.totalorder %s18, 0
      %p133 = por %p131, %p132
      %p134 = scmp.ne.s32.totalorder %s120, %s121
      %p135 = scmp.eq.s32.totalorder %s19, 2
      %p136 = por %p134, %p135
      %p138 = scmp.ne.s32.totalorder %s121, %s137
      %p139 = scmp.eq.s32.totalorder %s19, 0
      %p140 = por %p138, %p139
      %s141 = ssub.s32 %s21, %s35
      %p142 = scmp.eq.s32.totalorder %s141, 0
      %s144 = sadd.s32 %s143, 1
      %s145 = scalar_select %p142, %s143, %s144
      %p148 = pneg %p142
      %p149 = scmp.eq.s32.totalorder %s13, 2
      %p150 = por %p148, %p149
      %p151 = scmp.ne.s32.totalorder %s143, %s146
      %p152 = scmp.eq.s32.totalorder %s13, 0
      %p153 = por %p151, %p152
      %p154 = scmp.ne.s32.totalorder %s143, %s146
      %p155 = scmp.eq.s32.totalorder %s18, 2
      %p156 = por %p154, %p155
      %p157 = scmp.ne.s32.totalorder %s146, %s147
      %p158 = scmp.eq.s32.totalorder %s18, 0
      %p159 = por %p157, %p158
      %p160 = scmp.ne.s32.totalorder %s146, %s147
      %p161 = scmp.eq.s32.totalorder %s19, 2
      %p162 = por %p160, %p161
      %p164 = scmp.ne.s32.totalorder %s147, %s163
      %p165 = scmp.eq.s32.totalorder %s19, 0
      %p166 = por %p164, %p165
      %p167 = scmp.le.s32.totalorder 1, %s13
      %p168 = scmp.lt.s32.totalorder %s13, 4
      %p169 = pnand %p167, %p168
      %p170 = pneg %p169
      // Predicated region
      $region9: #{gcn_forward_fused.1} parent=5 // pred_check
        _
      $region10: #{gcn_forward_fused.1} parent=5 // pred_check_branch
        %172 = sbr.rel (%p169) target = $region12
      $region11: #{gcn_forward_fused.1} parent=5 // pred_region
        %s173 = ssub.s32 %s13, 1
        // Predicated region
        $region13: #{gcn_forward_fused.1} parent=11 // pred_check
          %p174 = pneg %p60
        $region14: #{gcn_forward_fused.1} parent=11 // pred_check_branch
          %176 = sbr.rel (%p174) target = $region16
        $region15: #{gcn_forward_fused.1} parent=11 // pred_region
          %s177 = smul.u32 16, %s24
          %179 = vsyncadd [#allocation6], 0
          %s180 = sadd.s32 %s25, %s177
          %s181 = smul.addr %s180, 4
          %s182 = scalar_lea.hbm %s0, %s181
          %s183 = sshll.u32 %s182, 4
          %s184 = int_to_ptr.hbm [resolvable:$true] %s183
          %s185 = sshll.u32 [#allocation5], 4
          %s186 = int_to_ptr.vmem [resolvable:$true] %s185
          %191 = dma.hbm_to_vmem [thread:$0]  %s184, 1024, %s186, [#allocation6], 64, 64, 4
        $region16: #{gcn_forward_fused.1} parent=11 // pred_fallthru
          _
        // Predicated region
        $region17: #{gcn_forward_fused.1} parent=11 // pred_check
          %p192 = pneg %p81
        $region18: #{gcn_forward_fused.1} parent=11 // pred_check_branch
          %194 = sbr.rel (%p192) target = $region20
        $region19: #{gcn_forward_fused.1} parent=11 // pred_region
          %196 = vsyncadd [#allocation9], 0
          %s197 = sshll.u32 %s1, 4
          %s198 = int_to_ptr.hbm [resolvable:$true] %s197
          %s199 = sshll.u32 [#allocation8], 4
          %s200 = int_to_ptr.vmem [resolvable:$true] %s199
          %205 = dma.hbm_to_vmem [thread:$0]  %s198, 1024, %s200, [#allocation9], 64, 64, 4
        $region20: #{gcn_forward_fused.1} parent=11 // pred_fallthru
          _
      $region12: #{gcn_forward_fused.1} parent=5 // pred_fallthru
        _
      %p206 = scmp.lt.s32.totalorder %s13, 3
      // Predicated region
      $region21: #{gcn_forward_fused.1} parent=5 // pred_check
        %p207 = pneg %p206
      $region22: #{gcn_forward_fused.1} parent=5 // pred_check_branch
        %209 = sbr.rel (%p207) target = $region24
      $region23: #{gcn_forward_fused.1} parent=5 // pred_region
        // Predicated region
        $region25: #{gcn_forward_fused.1} parent=23 // pred_check
          %p210 = pneg %p101
        $region26: #{gcn_forward_fused.1} parent=23 // pred_check_branch
          %212 = sbr.rel (%p210) target = $region28
        $region27: #{gcn_forward_fused.1} parent=23 // pred_region
          %s213 = sand.u32 %s13, 1
          %s214 = scalar_lea.sflag [#allocation6], %s213
          %s215 = sand.u32 %s91, 1
          %s216 = smul.addr %s215, 64
          %s217 = scalar_lea.vmem [#allocation10], %s216
          %219 = vsyncadd %s214, 0
          %s220 = smul.addr %s20, 16
          %s221 = smul.addr %s220, 4
          %s222 = scalar_lea.hbm %s2, %s221
          %s223 = sshll.u32 %s222, 4
          %s224 = int_to_ptr.hbm [resolvable:$true] %s223
          %s225 = sshll.u32 %s217, 4
          %s226 = int_to_ptr.vmem [resolvable:$true] %s225
          %231 = dma.hbm_to_vmem [thread:$0]  %s224, 1024, %s226, %s214, 64, 64, 4
        $region28: #{gcn_forward_fused.1} parent=23 // pred_fallthru
          _
        // Predicated region
        $region29: #{gcn_forward_fused.1} parent=23 // pred_check
          %p232 = pneg %p127
        $region30: #{gcn_forward_fused.1} parent=23 // pred_check_branch
          %234 = sbr.rel (%p232) target = $region32
        $region31: #{gcn_forward_fused.1} parent=23 // pred_region
          %s235 = sand.u32 %s13, 1
          %s236 = scalar_lea.sflag [#allocation6], %s235
          %s237 = sand.u32 %s117, 1
          %s238 = scalar_lea.vmem [#allocation11], %s237
          %240 = vsyncadd %s236, 0
          %s241 = scalar_lea.hbm %s3, %s20
          %s243 = sshll.u32 %s241, 4
          %s244 = int_to_ptr.hbm [resolvable:$true] %s243
          %s245 = sshll.u32 %s238, 4
          %s246 = int_to_ptr.vmem [resolvable:$true] %s245
          %248 = dma.hbm_to_vmem [thread:$0]  %s244, 16, %s246, %s236
        $region32: #{gcn_forward_fused.1} parent=23 // pred_fallthru
          _
      $region24: #{gcn_forward_fused.1} parent=5 // pred_fallthru
        _
      %p249 = scmp.le.s32.totalorder 1, %s13
      %p250 = scmp.lt.s32.totalorder %s13, 4
      %p251 = pnand %p249, %p250
      %p252 = pneg %p251
      // Predicated region
      $region33: #{gcn_forward_fused.1} parent=5 // pred_check
        _
      $region34: #{gcn_forward_fused.1} parent=5 // pred_check_branch
        %254 = sbr.rel (%p251) target = $region36
      $region35: #{gcn_forward_fused.1} parent=5 // pred_region
        %s255 = ssub.s32 %s13, 1
        // Predicated region
        $region37: #{gcn_forward_fused.1} parent=35 // pred_check
          %p256 = pneg %p60
        $region38: #{gcn_forward_fused.1} parent=35 // pred_check_branch
          %258 = sbr.rel (%p256) target = $region40
        $region39: #{gcn_forward_fused.1} parent=35 // pred_region
          %260 = dma.done [#allocation6], 1024
        $region40: #{gcn_forward_fused.1} parent=35 // pred_fallthru
          _
        // Predicated region
        $region41: #{gcn_forward_fused.1} parent=35 // pred_check
          %p261 = pneg %p81
        $region42: #{gcn_forward_fused.1} parent=35 // pred_check_branch
          %263 = sbr.rel (%p261) target = $region44
        $region43: #{gcn_forward_fused.1} parent=35 // pred_region
          %265 = dma.done [#allocation9], 1024
        $region44: #{gcn_forward_fused.1} parent=35 // pred_fallthru
          _
        %s266 = sand.u32 %s18, 1
        %s267 = scalar_lea.sflag [#allocation6], %s266
        %s268 = sand.u32 %s94, 1
        %s269 = smul.addr %s268, 64
        %s270 = scalar_lea.vmem [#allocation10], %s269
        // Predicated region
        $region45: #{gcn_forward_fused.1} parent=35 // pred_check
          %p271 = pneg %p107
        $region46: #{gcn_forward_fused.1} parent=35 // pred_check_branch
          %273 = sbr.rel (%p271) target = $region48
        $region47: #{gcn_forward_fused.1} parent=35 // pred_region
          %275 = dma.done %s267, 1024
        $region48: #{gcn_forward_fused.1} parent=35 // pred_fallthru
          _
        %s276 = sand.u32 %s18, 1
        %s277 = scalar_lea.sflag [#allocation6], %s276
        %s278 = sand.u32 %s120, 1
        %s279 = scalar_lea.vmem [#allocation11], %s278
        // Predicated region
        $region49: #{gcn_forward_fused.1} parent=35 // pred_check
          %p280 = pneg %p133
        $region50: #{gcn_forward_fused.1} parent=35 // pred_check_branch
          %282 = sbr.rel (%p280) target = $region52
        $region51: #{gcn_forward_fused.1} parent=35 // pred_region
          %284 = dma.done %s277, 16
        $region52: #{gcn_forward_fused.1} parent=35 // pred_fallthru
          _
        %p285 = pneg %p60
        %p286 = pneg %p57
        %p287 = pneg %p81
        %p288 = pneg %p78
        %s289 = sand.u32 %s18, 1
        %s290 = scalar_lea.sflag [#allocation6], %s289
        %s291 = sand.u32 %s94, 1
        %s292 = smul.addr %s291, 64
        %s293 = scalar_lea.vmem [#allocation10], %s292
        %p294 = pneg %p107
        %p295 = pneg %p104
        %s296 = sand.u32 %s18, 1
        %s297 = scalar_lea.sflag [#allocation6], %s296
        %s298 = sand.u32 %s120, 1
        %s299 = scalar_lea.vmem [#allocation11], %s298
        %p300 = pneg %p133
        %p301 = pneg %p130
        %p302 = pneg %p159
        %p303 = pneg %p156
        %s304 = smul.u32 16, %s24
        %s305 = smul.u32 16, %s24
        %p306 = scmp.eq.s32.totalorder %s23, 0
        %p307 = scmp.eq.s32.totalorder %s24, 0
        %p308 = pnand %p306, %p307
        %p309 = pneg %p308
        %p310 = scmp.eq.s32.totalorder %s25, 0
        %p311 = pnand %p309, %p310
        %p312 = pneg %p311
        // Predicated region
        $region53: #{gcn_forward_fused.1} parent=35 // pred_check
          _
        $region54: #{gcn_forward_fused.1} parent=35 // pred_check_branch
          %314 = sbr.rel (%p311) target = $region56
        $region55: #{gcn_forward_fused.1} parent=35 // pred_region
          %v315 = vld [vmem:[#allocation8] sm:$0xf]
          %v316 = vld [vmem:[#allocation8 + $0x4] sm:$0xf]
          %v317 = vld [vmem:[#allocation8 + $0x8] sm:$0xf]
          %v318 = vld [vmem:[#allocation8 + $0xc] sm:$0xf]
          %v319 = vld [vmem:[#allocation8 + $0x10] sm:$0xf]
          %v320 = vld [vmem:[#allocation8 + $0x14] sm:$0xf]
          %v321 = vld [vmem:[#allocation8 + $0x18] sm:$0xf]
          %v322 = vld [vmem:[#allocation8 + $0x1c] sm:$0xf]
          %v323 = vld [vmem:[#allocation8 + $0x20] sm:$0xf]
          %v324 = vld [vmem:[#allocation8 + $0x24] sm:$0xf]
          %v325 = vld [vmem:[#allocation8 + $0x28] sm:$0xf]
          %v326 = vld [vmem:[#allocation8 + $0x2c] sm:$0xf]
          %v327 = vld [vmem:[#allocation8 + $0x30] sm:$0xf]
          %v328 = vld [vmem:[#allocation8 + $0x34] sm:$0xf]
          %v329 = vld [vmem:[#allocation8 + $0x38] sm:$0xf]
          %v330 = vld [vmem:[#allocation8 + $0x3c] sm:$0xf]
          %331 = vst [vmem:[#allocation2] sm:$0xf] %v315
          %332 = vst [vmem:[#allocation2 + $0x4] sm:$0xf] %v316
          %333 = vst [vmem:[#allocation2 + $0x8] sm:$0xf] %v317
          %334 = vst [vmem:[#allocation2 + $0xc] sm:$0xf] %v318
          %335 = vst [vmem:[#allocation2 + $0x10] sm:$0xf] %v319
          %336 = vst [vmem:[#allocation2 + $0x14] sm:$0xf] %v320
          %337 = vst [vmem:[#allocation2 + $0x18] sm:$0xf] %v321
          %338 = vst [vmem:[#allocation2 + $0x1c] sm:$0xf] %v322
          %339 = vst [vmem:[#allocation2 + $0x20] sm:$0xf] %v323
          %340 = vst [vmem:[#allocation2 + $0x24] sm:$0xf] %v324
          %341 = vst [vmem:[#allocation2 + $0x28] sm:$0xf] %v325
          %342 = vst [vmem:[#allocation2 + $0x2c] sm:$0xf] %v326
          %343 = vst [vmem:[#allocation2 + $0x30] sm:$0xf] %v327
          %344 = vst [vmem:[#allocation2 + $0x34] sm:$0xf] %v328
          %345 = vst [vmem:[#allocation2 + $0x38] sm:$0xf] %v329
          %346 = vst [vmem:[#allocation2 + $0x3c] sm:$0xf] %v330
        $region56: #{gcn_forward_fused.1} parent=35 // pred_fallthru
          _
        %p347 = pnand %p307, %p310
        %p348 = pneg %p347
        // Predicated region
        $region57: #{gcn_forward_fused.1} parent=35 // pred_check
          _
        $region58: #{gcn_forward_fused.1} parent=35 // pred_check_branch
          %350 = sbr.rel (%p347) target = $region60
        $region59: #{gcn_forward_fused.1} parent=35 // pred_region
          %v351 = vld [vmem:[#allocation2] sm:$0xf]
          %v352 = vld [vmem:[#allocation2 + $0x4] sm:$0xf]
          %v353 = vld [vmem:[#allocation2 + $0x8] sm:$0xf]
          %v354 = vld [vmem:[#allocation2 + $0xc] sm:$0xf]
          %v355 = vld [vmem:[#allocation2 + $0x10] sm:$0xf]
          %v356 = vld [vmem:[#allocation2 + $0x14] sm:$0xf]
          %v357 = vld [vmem:[#allocation2 + $0x18] sm:$0xf]
          %v358 = vld [vmem:[#allocation2 + $0x1c] sm:$0xf]
          %v359 = vld [vmem:[#allocation2 + $0x20] sm:$0xf]
          %v360 = vld [vmem:[#allocation2 + $0x24] sm:$0xf]
          %v361 = vld [vmem:[#allocation2 + $0x28] sm:$0xf]
          %v362 = vld [vmem:[#allocation2 + $0x2c] sm:$0xf]
          %v363 = vld [vmem:[#allocation2 + $0x30] sm:$0xf]
          %v364 = vld [vmem:[#allocation2 + $0x34] sm:$0xf]
          %v365 = vld [vmem:[#allocation2 + $0x38] sm:$0xf]
          %v366 = vld [vmem:[#allocation2 + $0x3c] sm:$0xf]
          %v367 = vld [vmem:[%s270] sm:$0xf]
          %v368 = vld [vmem:[%s270 + $0x4] sm:$0xf]
          %v369 = vld [vmem:[%s270 + $0x8] sm:$0xf]
          %v370 = vld [vmem:[%s270 + $0xc] sm:$0xf]
          %v371 = vld [vmem:[%s270 + $0x10] sm:$0xf]
          %v372 = vld [vmem:[%s270 + $0x14] sm:$0xf]
          %v373 = vld [vmem:[%s270 + $0x18] sm:$0xf]
          %v374 = vld [vmem:[%s270 + $0x1c] sm:$0xf]
          %v375 = vld [vmem:[%s270 + $0x20] sm:$0xf]
          %v376 = vld [vmem:[%s270 + $0x24] sm:$0xf]
          %v377 = vld [vmem:[%s270 + $0x28] sm:$0xf]
          %v378 = vld [vmem:[%s270 + $0x2c] sm:$0xf]
          %v379 = vld [vmem:[%s270 + $0x30] sm:$0xf]
          %v380 = vld [vmem:[%s270 + $0x34] sm:$0xf]
          %v381 = vld [vmem:[%s270 + $0x38] sm:$0xf]
          %v382 = vld [vmem:[%s270 + $0x3c] sm:$0xf]
          %v399 = vunpack.c.l.b16 %v351
          %v400 = vunpack.c.l.b16 %v352
          %v401 = vunpack.c.l.b16 %v353
          %v402 = vunpack.c.l.b16 %v354
          %v403 = vunpack.c.l.b16 %v355
          %v404 = vunpack.c.l.b16 %v356
          %v405 = vunpack.c.l.b16 %v357
          %v406 = vunpack.c.l.b16 %v358
          %v407 = vunpack.c.l.b16 %v359
          %v408 = vunpack.c.l.b16 %v360
          %v409 = vunpack.c.l.b16 %v361
          %v410 = vunpack.c.l.b16 %v362
          %v411 = vunpack.c.l.b16 %v363
          %v412 = vunpack.c.l.b16 %v364
          %v413 = vunpack.c.l.b16 %v365
          %v414 = vunpack.c.l.b16 %v366
          %v415 = vpack.c.b16 %v400, %v399
          %v416 = vpack.c.b16 %v402, %v401
          %v417 = vpack.c.b16 %v404, %v403
          %v418 = vpack.c.b16 %v406, %v405
          %v419 = vpack.c.b16 %v408, %v407
          %v420 = vpack.c.b16 %v410, %v409
          %v421 = vpack.c.b16 %v412, %v411
          %v422 = vpack.c.b16 %v414, %v413
          %v447 = vunpack.c.l.b16 %v367
          %v448 = vunpack.c.l.b16 %v368
          %v449 = vunpack.c.l.b16 %v369
          %v450 = vunpack.c.l.b16 %v370
          %v451 = vunpack.c.l.b16 %v371
          %v452 = vunpack.c.l.b16 %v372
          %v453 = vunpack.c.l.b16 %v373
          %v454 = vunpack.c.l.b16 %v374
          %v455 = vunpack.c.l.b16 %v375
          %v456 = vunpack.c.l.b16 %v376
          %v457 = vunpack.c.l.b16 %v377
          %v458 = vunpack.c.l.b16 %v378
          %v459 = vunpack.c.l.b16 %v379
          %v460 = vunpack.c.l.b16 %v380
          %v461 = vunpack.c.l.b16 %v381
          %v462 = vunpack.c.l.b16 %v382
          %v463 = vpack.c.b16 %v448, %v447
          %v464 = vpack.c.b16 %v450, %v449
          %v465 = vpack.c.b16 %v452, %v451
          %v466 = vpack.c.b16 %v454, %v453
          %v467 = vpack.c.b16 %v456, %v455
          %v468 = vpack.c.b16 %v458, %v457
          %v469 = vpack.c.b16 %v460, %v459
          %v470 = vpack.c.b16 %v462, %v461
          %479 = vmatpush.bf16.msra.mxu0 %v470
          %480 = vmatpush.bf16.msra.mxu0 %v469
          %481 = vmatpush.bf16.msra.mxu0 %v468
          %482 = vmatpush.bf16.msra.mxu0 %v467
          %483 = vmatpush.bf16.msra.mxu0 %v466
          %484 = vmatpush.bf16.msra.mxu0 %v465
          %485 = vmatpush.bf16.msra.mxu0 %v464
          %486 = vmatpush.bf16.msra.mxu0 %v463
          %487 = vmatmul.bf16.gmra.mxu0 %v415
          %v488 = vpop.f32.mrf.mxu0
          %v489 = vadd.f32 0.0, %v488
          %v490 = vpop.f32.mrf.mxu0
          %v491 = vadd.f32 0.0, %v490
          %492 = vmatmul.bf16.gmra.mxu0 %v416
          %v493 = vpop.f32.mrf.mxu0
          %v494 = vadd.f32 0.0, %v493
          %v495 = vpop.f32.mrf.mxu0
          %v496 = vadd.f32 0.0, %v495
          %497 = vmatmul.bf16.gmra.mxu0 %v417
          %v498 = vpop.f32.mrf.mxu0
          %v499 = vadd.f32 0.0, %v498
          %v500 = vpop.f32.mrf.mxu0
          %v501 = vadd.f32 0.0, %v500
          %502 = vmatmul.bf16.gmra.mxu0 %v418
          %v503 = vpop.f32.mrf.mxu0
          %v504 = vadd.f32 0.0, %v503
          %v505 = vpop.f32.mrf.mxu0
          %v506 = vadd.f32 0.0, %v505
          %507 = vmatmul.bf16.gmra.mxu0 %v419
          %v508 = vpop.f32.mrf.mxu0
          %v509 = vadd.f32 0.0, %v508
          %v510 = vpop.f32.mrf.mxu0
          %v511 = vadd.f32 0.0, %v510
          %512 = vmatmul.bf16.gmra.mxu0 %v420
          %v513 = vpop.f32.mrf.mxu0
          %v514 = vadd.f32 0.0, %v513
          %v515 = vpop.f32.mrf.mxu0
          %v516 = vadd.f32 0.0, %v515
          %517 = vmatmul.bf16.gmra.mxu0 %v421
          %v518 = vpop.f32.mrf.mxu0
          %v519 = vadd.f32 0.0, %v518
          %v520 = vpop.f32.mrf.mxu0
          %v521 = vadd.f32 0.0, %v520
          %522 = vmatmul.bf16.gmra.mxu0 %v422
          %v523 = vpop.f32.mrf.mxu0
          %v524 = vadd.f32 0.0, %v523
          %v525 = vpop.f32.mrf.mxu0
          %v526 = vadd.f32 0.0, %v525
          %527 = vdwg.mxu0
          %v528 = vpack.c.bf16 %v489, %v489
          %v529 = vpack.c.bf16 %v491, %v491
          %v530 = vpack.c.bf16 %v494, %v494
          %v531 = vpack.c.bf16 %v496, %v496
          %v532 = vpack.c.bf16 %v499, %v499
          %v533 = vpack.c.bf16 %v501, %v501
          %v534 = vpack.c.bf16 %v504, %v504
          %v535 = vpack.c.bf16 %v506, %v506
          %v536 = vpack.c.bf16 %v509, %v509
          %v537 = vpack.c.bf16 %v511, %v511
          %v538 = vpack.c.bf16 %v514, %v514
          %v539 = vpack.c.bf16 %v516, %v516
          %v540 = vpack.c.bf16 %v519, %v519
          %v541 = vpack.c.bf16 %v521, %v521
          %v542 = vpack.c.bf16 %v524, %v524
          %v543 = vpack.c.bf16 %v526, %v526
          %544 = vst [vmem:[#allocation3] sm:$0xf] %v528
          %545 = vst [vmem:[#allocation3 + $0x4] sm:$0xf] %v529
          %546 = vst [vmem:[#allocation3 + $0x8] sm:$0xf] %v530
          %547 = vst [vmem:[#allocation3 + $0xc] sm:$0xf] %v531
          %548 = vst [vmem:[#allocation3 + $0x10] sm:$0xf] %v532
          %549 = vst [vmem:[#allocation3 + $0x14] sm:$0xf] %v533
          %550 = vst [vmem:[#allocation3 + $0x18] sm:$0xf] %v534
          %551 = vst [vmem:[#allocation3 + $0x1c] sm:$0xf] %v535
          %552 = vst [vmem:[#allocation3 + $0x20] sm:$0xf] %v536
          %553 = vst [vmem:[#allocation3 + $0x24] sm:$0xf] %v537
          %554 = vst [vmem:[#allocation3 + $0x28] sm:$0xf] %v538
          %555 = vst [vmem:[#allocation3 + $0x2c] sm:$0xf] %v539
          %556 = vst [vmem:[#allocation3 + $0x30] sm:$0xf] %v540
          %557 = vst [vmem:[#allocation3 + $0x34] sm:$0xf] %v541
          %558 = vst [vmem:[#allocation3 + $0x38] sm:$0xf] %v542
          %559 = vst [vmem:[#allocation3 + $0x3c] sm:$0xf] %v543
        $region60: #{gcn_forward_fused.1} parent=35 // pred_fallthru
          _
        // Predicated region
        $region61: #{gcn_forward_fused.1} parent=35 // pred_check
          %p560 = pneg %p310
        $region62: #{gcn_forward_fused.1} parent=35 // pred_check_branch
          %562 = sbr.rel (%p560) target = $region64
        $region63: #{gcn_forward_fused.1} parent=35 // pred_region
          %v563 = vld [vmem:[%s279] sm:$0x1]
          %v565 = vperm.slane %v563, 0
          %567 = vst [vmem:[#allocation4] sm:$0xff] %v565
          %568 = vst [vmem:[#allocation4 + $0x8] sm:$0xff] %v565
          %569 = vst [vmem:[#allocation4 + $0x10] sm:$0xff] %v565
          %570 = vst [vmem:[#allocation4 + $0x18] sm:$0xff] %v565
          %571 = vst [vmem:[#allocation4 + $0x20] sm:$0xff] %v565
          %572 = vst [vmem:[#allocation4 + $0x28] sm:$0xff] %v565
          %573 = vst [vmem:[#allocation4 + $0x30] sm:$0xff] %v565
          %574 = vst [vmem:[#allocation4 + $0x38] sm:$0xff] %v565
          %575 = vst [vmem:[#allocation4 + $0x40] sm:$0xff] %v565
          %576 = vst [vmem:[#allocation4 + $0x48] sm:$0xff] %v565
          %577 = vst [vmem:[#allocation4 + $0x50] sm:$0xff] %v565
          %578 = vst [vmem:[#allocation4 + $0x58] sm:$0xff] %v565
          %579 = vst [vmem:[#allocation4 + $0x60] sm:$0xff] %v565
          %580 = vst [vmem:[#allocation4 + $0x68] sm:$0xff] %v565
          %581 = vst [vmem:[#allocation4 + $0x70] sm:$0xff] %v565
          %582 = vst [vmem:[#allocation4 + $0x78] sm:$0xff] %v565
        $region64: #{gcn_forward_fused.1} parent=35 // pred_fallthru
          _
        %s583 = smul.u32 %s25, 128
        %v584 = vld [vmem:[#allocation4] sm:$0xff]
        %v585 = vld [vmem:[#allocation4 + $0x8] sm:$0xff]
        %v586 = vld [vmem:[#allocation4 + $0x10] sm:$0xff]
        %v587 = vld [vmem:[#allocation4 + $0x18] sm:$0xff]
        %v588 = vld [vmem:[#allocation4 + $0x20] sm:$0xff]
        %v589 = vld [vmem:[#allocation4 + $0x28] sm:$0xff]
        %v590 = vld [vmem:[#allocation4 + $0x30] sm:$0xff]
        %v591 = vld [vmem:[#allocation4 + $0x38] sm:$0xff]
        %v592 = vld [vmem:[#allocation4 + $0x40] sm:$0xff]
        %v593 = vld [vmem:[#allocation4 + $0x48] sm:$0xff]
        %v594 = vld [vmem:[#allocation4 + $0x50] sm:$0xff]
        %v595 = vld [vmem:[#allocation4 + $0x58] sm:$0xff]
        %v596 = vld [vmem:[#allocation4 + $0x60] sm:$0xff]
        %v597 = vld [vmem:[#allocation4 + $0x68] sm:$0xff]
        %v598 = vld [vmem:[#allocation4 + $0x70] sm:$0xff]
        %v599 = vld [vmem:[#allocation4 + $0x78] sm:$0xff]
        %v600 = vld [vmem:[#allocation5] sm:$0xf]
        %v601 = vld [vmem:[#allocation5 + $0x4] sm:$0xf]
        %v602 = vld [vmem:[#allocation5 + $0x8] sm:$0xf]
        %v603 = vld [vmem:[#allocation5 + $0xc] sm:$0xf]
        %v604 = vld [vmem:[#allocation5 + $0x10] sm:$0xf]
        %v605 = vld [vmem:[#allocation5 + $0x14] sm:$0xf]
        %v606 = vld [vmem:[#allocation5 + $0x18] sm:$0xf]
        %v607 = vld [vmem:[#allocation5 + $0x1c] sm:$0xf]
        %v608 = vld [vmem:[#allocation5 + $0x20] sm:$0xf]
        %v609 = vld [vmem:[#allocation5 + $0x24] sm:$0xf]
        %v610 = vld [vmem:[#allocation5 + $0x28] sm:$0xf]
        %v611 = vld [vmem:[#allocation5 + $0x2c] sm:$0xf]
        %v612 = vld [vmem:[#allocation5 + $0x30] sm:$0xf]
        %v613 = vld [vmem:[#allocation5 + $0x34] sm:$0xf]
        %v614 = vld [vmem:[#allocation5 + $0x38] sm:$0xf]
        %v615 = vld [vmem:[#allocation5 + $0x3c] sm:$0xf]
        %s616 = sshra.s32 %s583, 3
        %s617 = sand.u32 %s583, 7
        %s618 = smul.addr %s616, 4
        %s619 = scalar_lea.vmem [#allocation3], %s618
        %v620 = vld [vmem:[%s619] sm:$0xf]
        %v621 = vld [vmem:[%s619 + $0x4] sm:$0xf]
        %v622 = vld [vmem:[%s619 + $0x8] sm:$0xf]
        %v623 = vld [vmem:[%s619 + $0xc] sm:$0xf]
        %v624 = vld [vmem:[%s619 + $0x10] sm:$0xf]
        %v625 = vld [vmem:[%s619 + $0x14] sm:$0xf]
        %v626 = vld [vmem:[%s619 + $0x18] sm:$0xf]
        %v627 = vld [vmem:[%s619 + $0x1c] sm:$0xf]
        %v628 = vld [vmem:[%s619 + $0x20] sm:$0xf]
        %v629 = vld [vmem:[%s619 + $0x24] sm:$0xf]
        %v630 = vld [vmem:[%s619 + $0x28] sm:$0xf]
        %v631 = vld [vmem:[%s619 + $0x2c] sm:$0xf]
        %v632 = vld [vmem:[%s619 + $0x30] sm:$0xf]
        %v633 = vld [vmem:[%s619 + $0x34] sm:$0xf]
        %v634 = vld [vmem:[%s619 + $0x38] sm:$0xf]
        %v635 = vld [vmem:[%s619 + $0x3c] sm:$0xf]
        %v652 = vunpack.c.l.b16 %v600
        %v653 = vunpack.c.l.b16 %v601
        %v654 = vunpack.c.l.b16 %v602
        %v655 = vunpack.c.l.b16 %v603
        %v656 = vunpack.c.l.b16 %v604
        %v657 = vunpack.c.l.b16 %v605
        %v658 = vunpack.c.l.b16 %v606
        %v659 = vunpack.c.l.b16 %v607
        %v660 = vunpack.c.l.b16 %v608
        %v661 = vunpack.c.l.b16 %v609
        %v662 = vunpack.c.l.b16 %v610
        %v663 = vunpack.c.l.b16 %v611
        %v664 = vunpack.c.l.b16 %v612
        %v665 = vunpack.c.l.b16 %v613
        %v666 = vunpack.c.l.b16 %v614
        %v667 = vunpack.c.l.b16 %v615
        %v668 = vpack.c.b16 %v653, %v652
        %v669 = vpack.c.b16 %v655, %v654
        %v670 = vpack.c.b16 %v657, %v656
        %v671 = vpack.c.b16 %v659, %v658
        %v672 = vpack.c.b16 %v661, %v660
        %v673 = vpack.c.b16 %v663, %v662
        %v674 = vpack.c.b16 %v665, %v664
        %v675 = vpack.c.b16 %v667, %v666
        %v700 = vunpack.c.l.b16 %v620
        %v701 = vunpack.c.l.b16 %v621
        %v702 = vunpack.c.l.b16 %v622
        %v703 = vunpack.c.l.b16 %v623
        %v704 = vunpack.c.l.b16 %v624
        %v705 = vunpack.c.l.b16 %v625
        %v706 = vunpack.c.l.b16 %v626
        %v707 = vunpack.c.l.b16 %v627
        %v708 = vunpack.c.l.b16 %v628
        %v709 = vunpack.c.l.b16 %v629
        %v710 = vunpack.c.l.b16 %v630
        %v711 = vunpack.c.l.b16 %v631
        %v712 = vunpack.c.l.b16 %v632
        %v713 = vunpack.c.l.b16 %v633
        %v714 = vunpack.c.l.b16 %v634
        %v715 = vunpack.c.l.b16 %v635
        %v716 = vpack.c.b16 %v701, %v700
        %v717 = vpack.c.b16 %v703, %v702
        %v718 = vpack.c.b16 %v705, %v704
        %v719 = vpack.c.b16 %v707, %v706
        %v720 = vpack.c.b16 %v709, %v708
        %v721 = vpack.c.b16 %v711, %v710
        %v722 = vpack.c.b16 %v713, %v712
        %v723 = vpack.c.b16 %v715, %v714
        %732 = vmatpush.bf16.msra.mxu0 %v723
        %733 = vmatpush.bf16.msra.mxu0 %v722
        %734 = vmatpush.bf16.msra.mxu0 %v721
        %735 = vmatpush.bf16.msra.mxu0 %v720
        %736 = vmatpush.bf16.msra.mxu0 %v719
        %737 = vmatpush.bf16.msra.mxu0 %v718
        %738 = vmatpush.bf16.msra.mxu0 %v717
        %739 = vmatpush.bf16.msra.mxu0 %v716
        %740 = vmatmul.bf16.gmra.mxu0 %v668
        %v741 = vpop.f32.mrf.mxu0
        %v742 = vadd.f32 0.0, %v741
        %v743 = vpop.f32.mrf.mxu0
        %v744 = vadd.f32 0.0, %v743
        %745 = vmatmul.bf16.gmra.mxu0 %v669
        %v746 = vpop.f32.mrf.mxu0
        %v747 = vadd.f32 0.0, %v746
        %v748 = vpop.f32.mrf.mxu0
        %v749 = vadd.f32 0.0, %v748
        %750 = vmatmul.bf16.gmra.mxu0 %v670
        %v751 = vpop.f32.mrf.mxu0
        %v752 = vadd.f32 0.0, %v751
        %v753 = vpop.f32.mrf.mxu0
        %v754 = vadd.f32 0.0, %v753
        %755 = vmatmul.bf16.gmra.mxu0 %v671
        %v756 = vpop.f32.mrf.mxu0
        %v757 = vadd.f32 0.0, %v756
        %v758 = vpop.f32.mrf.mxu0
        %v759 = vadd.f32 0.0, %v758
        %760 = vmatmul.bf16.gmra.mxu0 %v672
        %v761 = vpop.f32.mrf.mxu0
        %v762 = vadd.f32 0.0, %v761
        %v763 = vpop.f32.mrf.mxu0
        %v764 = vadd.f32 0.0, %v763
        %765 = vmatmul.bf16.gmra.mxu0 %v673
        %v766 = vpop.f32.mrf.mxu0
        %v767 = vadd.f32 0.0, %v766
        %v768 = vpop.f32.mrf.mxu0
        %v769 = vadd.f32 0.0, %v768
        %770 = vmatmul.bf16.gmra.mxu0 %v674
        %v771 = vpop.f32.mrf.mxu0
        %v772 = vadd.f32 0.0, %v771
        %v773 = vpop.f32.mrf.mxu0
        %v774 = vadd.f32 0.0, %v773
        %775 = vmatmul.bf16.gmra.mxu0 %v675
        %v776 = vpop.f32.mrf.mxu0
        %v777 = vadd.f32 0.0, %v776
        %v778 = vpop.f32.mrf.mxu0
        %v779 = vadd.f32 0.0, %v778
        %780 = vdwg.mxu0
        %v781 = vadd.f32 %v584, %v742
        %v782 = vadd.f32 %v585, %v744
        %v783 = vadd.f32 %v586, %v747
        %v784 = vadd.f32 %v587, %v749
        %v785 = vadd.f32 %v588, %v752
        %v786 = vadd.f32 %v589, %v754
        %v787 = vadd.f32 %v590, %v757
        %v788 = vadd.f32 %v591, %v759
        %v789 = vadd.f32 %v592, %v762
        %v790 = vadd.f32 %v593, %v764
        %v791 = vadd.f32 %v594, %v767
        %v792 = vadd.f32 %v595, %v769
        %v793 = vadd.f32 %v596, %v772
        %v794 = vadd.f32 %v597, %v774
        %v795 = vadd.f32 %v598, %v777
        %v796 = vadd.f32 %v599, %v779
        %797 = vst [vmem:[#allocation4] sm:$0xff] %v781
        %798 = vst [vmem:[#allocation4 + $0x8] sm:$0xff] %v782
        %799 = vst [vmem:[#allocation4 + $0x10] sm:$0xff] %v783
        %800 = vst [vmem:[#allocation4 + $0x18] sm:$0xff] %v784
        %801 = vst [vmem:[#allocation4 + $0x20] sm:$0xff] %v785
        %802 = vst [vmem:[#allocation4 + $0x28] sm:$0xff] %v786
        %803 = vst [vmem:[#allocation4 + $0x30] sm:$0xff] %v787
        %804 = vst [vmem:[#allocation4 + $0x38] sm:$0xff] %v788
        %805 = vst [vmem:[#allocation4 + $0x40] sm:$0xff] %v789
        %806 = vst [vmem:[#allocation4 + $0x48] sm:$0xff] %v790
        %807 = vst [vmem:[#allocation4 + $0x50] sm:$0xff] %v791
        %808 = vst [vmem:[#allocation4 + $0x58] sm:$0xff] %v792
        %809 = vst [vmem:[#allocation4 + $0x60] sm:$0xff] %v793
        %810 = vst [vmem:[#allocation4 + $0x68] sm:$0xff] %v794
        %811 = vst [vmem:[#allocation4 + $0x70] sm:$0xff] %v795
        %812 = vst [vmem:[#allocation4 + $0x78] sm:$0xff] %v796
        %p813 = scmp.eq.s32.totalorder %s23, 2
        // Predicated region
        $region65: #{gcn_forward_fused.1} parent=35 // pred_check
          %p814 = pneg %p310
        $region66: #{gcn_forward_fused.1} parent=35 // pred_check_branch
          %816 = sbr.rel (%p814) target = $region68
        $region67: #{gcn_forward_fused.1} parent=35 // pred_region
          %v817 = vld [vmem:[#allocation4] sm:$0xff]
          %v818 = vld [vmem:[#allocation4 + $0x8] sm:$0xff]
          %v819 = vld [vmem:[#allocation4 + $0x10] sm:$0xff]
          %v820 = vld [vmem:[#allocation4 + $0x18] sm:$0xff]
          %v821 = vld [vmem:[#allocation4 + $0x20] sm:$0xff]
          %v822 = vld [vmem:[#allocation4 + $0x28] sm:$0xff]
          %v823 = vld [vmem:[#allocation4 + $0x30] sm:$0xff]
          %v824 = vld [vmem:[#allocation4 + $0x38] sm:$0xff]
          %v825 = vld [vmem:[#allocation4 + $0x40] sm:$0xff]
          %v826 = vld [vmem:[#allocation4 + $0x48] sm:$0xff]
          %v827 = vld [vmem:[#allocation4 + $0x50] sm:$0xff]
          %v828 = vld [vmem:[#allocation4 + $0x58] sm:$0xff]
          %v829 = vld [vmem:[#allocation4 + $0x60] sm:$0xff]
          %v830 = vld [vmem:[#allocation4 + $0x68] sm:$0xff]
          %v831 = vld [vmem:[#allocation4 + $0x70] sm:$0xff]
          %v832 = vld [vmem:[#allocation4 + $0x78] sm:$0xff]
          %s833 = scalar_select %p813, 1.0, 0.2
          %vm834 = vcmp.ge.f32.partialorder %v817, 0.0
          %vm835 = vcmp.ge.f32.partialorder %v818, 0.0
          %vm836 = vcmp.ge.f32.partialorder %v819, 0.0
          %vm837 = vcmp.ge.f32.partialorder %v820, 0.0
          %vm838 = vcmp.ge.f32.partialorder %v821, 0.0
          %vm839 = vcmp.ge.f32.partialorder %v822, 0.0
          %vm840 = vcmp.ge.f32.partialorder %v823, 0.0
          %vm841 = vcmp.ge.f32.partialorder %v824, 0.0
          %vm842 = vcmp.ge.f32.partialorder %v825, 0.0
          %vm843 = vcmp.ge.f32.partialorder %v826, 0.0
          %vm844 = vcmp.ge.f32.partialorder %v827, 0.0
          %vm845 = vcmp.ge.f32.partialorder %v828, 0.0
          %vm846 = vcmp.ge.f32.partialorder %v829, 0.0
          %vm847 = vcmp.ge.f32.partialorder %v830, 0.0
          %vm848 = vcmp.ge.f32.partialorder %v831, 0.0
          %vm849 = vcmp.ge.f32.partialorder %v832, 0.0
          %v850 = vstv %s833
          %v851 = vmul.f32 %v850, %v817
          %v852 = vmul.f32 %v850, %v818
          %v853 = vmul.f32 %v850, %v819
          %v854 = vmul.f32 %v850, %v820
          %v855 = vmul.f32 %v850, %v821
          %v856 = vmul.f32 %v850, %v822
          %v857 = vmul.f32 %v850, %v823
          %v858 = vmul.f32 %v850, %v824
          %v859 = vmul.f32 %v850, %v825
          %v860 = vmul.f32 %v850, %v826
          %v861 = vmul.f32 %v850, %v827
          %v862 = vmul.f32 %v850, %v828
          %v863 = vmul.f32 %v850, %v829
          %v864 = vmul.f32 %v850, %v830
          %v865 = vmul.f32 %v850, %v831
          %v866 = vmul.f32 %v850, %v832
          %v867 = vsel %vm834, %v817, %v851
          %v868 = vsel %vm835, %v818, %v852
          %v869 = vsel %vm836, %v819, %v853
          %v870 = vsel %vm837, %v820, %v854
          %v871 = vsel %vm838, %v821, %v855
          %v872 = vsel %vm839, %v822, %v856
          %v873 = vsel %vm840, %v823, %v857
          %v874 = vsel %vm841, %v824, %v858
          %v875 = vsel %vm842, %v825, %v859
          %v876 = vsel %vm843, %v826, %v860
          %v877 = vsel %vm844, %v827, %v861
          %v878 = vsel %vm845, %v828, %v862
          %v879 = vsel %vm846, %v829, %v863
          %v880 = vsel %vm847, %v830, %v864
          %v881 = vsel %vm848, %v831, %v865
          %v882 = vsel %vm849, %v832, %v866
          %883 = vst [vmem:[#allocation4] sm:$0xff] %v867
          %884 = vst [vmem:[#allocation4 + $0x8] sm:$0xff] %v868
          %885 = vst [vmem:[#allocation4 + $0x10] sm:$0xff] %v869
          %886 = vst [vmem:[#allocation4 + $0x18] sm:$0xff] %v870
          %887 = vst [vmem:[#allocation4 + $0x20] sm:$0xff] %v871
          %888 = vst [vmem:[#allocation4 + $0x28] sm:$0xff] %v872
          %889 = vst [vmem:[#allocation4 + $0x30] sm:$0xff] %v873
          %890 = vst [vmem:[#allocation4 + $0x38] sm:$0xff] %v874
          %891 = vst [vmem:[#allocation4 + $0x40] sm:$0xff] %v875
          %892 = vst [vmem:[#allocation4 + $0x48] sm:$0xff] %v876
          %893 = vst [vmem:[#allocation4 + $0x50] sm:$0xff] %v877
          %894 = vst [vmem:[#allocation4 + $0x58] sm:$0xff] %v878
          %895 = vst [vmem:[#allocation4 + $0x60] sm:$0xff] %v879
          %896 = vst [vmem:[#allocation4 + $0x68] sm:$0xff] %v880
          %897 = vst [vmem:[#allocation4 + $0x70] sm:$0xff] %v881
          %898 = vst [vmem:[#allocation4 + $0x78] sm:$0xff] %v882
        $region68: #{gcn_forward_fused.1} parent=35 // pred_fallthru
          _
        %p899 = scmp.ne.s32.totalorder %s23, 2
        %p900 = pnand %p310, %p899
        %p901 = pneg %p900
        // Predicated region
        $region69: #{gcn_forward_fused.1} parent=35 // pred_check
          _
        $region70: #{gcn_forward_fused.1} parent=35 // pred_check_branch
          %903 = sbr.rel (%p900) target = $region72
        $region71: #{gcn_forward_fused.1} parent=35 // pred_region
          %s904 = smul.u32 %s24, 128
          %v905 = vld [vmem:[#allocation4] sm:$0xff]
          %v906 = vld [vmem:[#allocation4 + $0x8] sm:$0xff]
          %v907 = vld [vmem:[#allocation4 + $0x10] sm:$0xff]
          %v908 = vld [vmem:[#allocation4 + $0x18] sm:$0xff]
          %v909 = vld [vmem:[#allocation4 + $0x20] sm:$0xff]
          %v910 = vld [vmem:[#allocation4 + $0x28] sm:$0xff]
          %v911 = vld [vmem:[#allocation4 + $0x30] sm:$0xff]
          %v912 = vld [vmem:[#allocation4 + $0x38] sm:$0xff]
          %v913 = vld [vmem:[#allocation4 + $0x40] sm:$0xff]
          %v914 = vld [vmem:[#allocation4 + $0x48] sm:$0xff]
          %v915 = vld [vmem:[#allocation4 + $0x50] sm:$0xff]
          %v916 = vld [vmem:[#allocation4 + $0x58] sm:$0xff]
          %v917 = vld [vmem:[#allocation4 + $0x60] sm:$0xff]
          %v918 = vld [vmem:[#allocation4 + $0x68] sm:$0xff]
          %v919 = vld [vmem:[#allocation4 + $0x70] sm:$0xff]
          %v920 = vld [vmem:[#allocation4 + $0x78] sm:$0xff]
          %v921 = vpack.c.bf16 %v905, %v905
          %v922 = vpack.c.bf16 %v906, %v906
          %v923 = vpack.c.bf16 %v907, %v907
          %v924 = vpack.c.bf16 %v908, %v908
          %v925 = vpack.c.bf16 %v909, %v909
          %v926 = vpack.c.bf16 %v910, %v910
          %v927 = vpack.c.bf16 %v911, %v911
          %v928 = vpack.c.bf16 %v912, %v912
          %v929 = vpack.c.bf16 %v913, %v913
          %v930 = vpack.c.bf16 %v914, %v914
          %v931 = vpack.c.bf16 %v915, %v915
          %v932 = vpack.c.bf16 %v916, %v916
          %v933 = vpack.c.bf16 %v917, %v917
          %v934 = vpack.c.bf16 %v918, %v918
          %v935 = vpack.c.bf16 %v919, %v919
          %v936 = vpack.c.bf16 %v920, %v920
          %s937 = sshra.s32 %s904, 3
          %s938 = sand.u32 %s904, 7
          %s939 = smul.addr %s937, 4
          %s940 = scalar_lea.vmem [#allocation2], %s939
          %941 = vst [vmem:[%s940] sm:$0xf] %v921
          %942 = vst [vmem:[%s940 + $0x4] sm:$0xf] %v922
          %943 = vst [vmem:[%s940 + $0x8] sm:$0xf] %v923
          %944 = vst [vmem:[%s940 + $0xc] sm:$0xf] %v924
          %945 = vst [vmem:[%s940 + $0x10] sm:$0xf] %v925
          %946 = vst [vmem:[%s940 + $0x14] sm:$0xf] %v926
          %947 = vst [vmem:[%s940 + $0x18] sm:$0xf] %v927
          %948 = vst [vmem:[%s940 + $0x1c] sm:$0xf] %v928
          %949 = vst [vmem:[%s940 + $0x20] sm:$0xf] %v929
          %950 = vst [vmem:[%s940 + $0x24] sm:$0xf] %v930
          %951 = vst [vmem:[%s940 + $0x28] sm:$0xf] %v931
          %952 = vst [vmem:[%s940 + $0x2c] sm:$0xf] %v932
          %953 = vst [vmem:[%s940 + $0x30] sm:$0xf] %v933
          %954 = vst [vmem:[%s940 + $0x34] sm:$0xf] %v934
          %955 = vst [vmem:[%s940 + $0x38] sm:$0xf] %v935
          %956 = vst [vmem:[%s940 + $0x3c] sm:$0xf] %v936
        $region72: #{gcn_forward_fused.1} parent=35 // pred_fallthru
          _
        %p957 = pnand %p310, %p813
        %p958 = pneg %p957
        // Predicated region
        $region73: #{gcn_forward_fused.1} parent=35 // pred_check
          _
        $region74: #{gcn_forward_fused.1} parent=35 // pred_check_branch
          %960 = sbr.rel (%p957) target = $region76
        $region75: #{gcn_forward_fused.1} parent=35 // pred_region
          %v961 = vld [vmem:[#allocation4] sm:$0xff]
          %v962 = vld [vmem:[#allocation4 + $0x8] sm:$0xff]
          %v963 = vld [vmem:[#allocation4 + $0x10] sm:$0xff]
          %v964 = vld [vmem:[#allocation4 + $0x18] sm:$0xff]
          %v965 = vld [vmem:[#allocation4 + $0x20] sm:$0xff]
          %v966 = vld [vmem:[#allocation4 + $0x28] sm:$0xff]
          %v967 = vld [vmem:[#allocation4 + $0x30] sm:$0xff]
          %v968 = vld [vmem:[#allocation4 + $0x38] sm:$0xff]
          %v969 = vld [vmem:[#allocation4 + $0x40] sm:$0xff]
          %v970 = vld [vmem:[#allocation4 + $0x48] sm:$0xff]
          %v971 = vld [vmem:[#allocation4 + $0x50] sm:$0xff]
          %v972 = vld [vmem:[#allocation4 + $0x58] sm:$0xff]
          %v973 = vld [vmem:[#allocation4 + $0x60] sm:$0xff]
          %v974 = vld [vmem:[#allocation4 + $0x68] sm:$0xff]
          %v975 = vld [vmem:[#allocation4 + $0x70] sm:$0xff]
          %v976 = vld [vmem:[#allocation4 + $0x78] sm:$0xff]
          %977 = vst [vmem:[#allocation12] sm:$0xff] %v961
          %978 = vst [vmem:[#allocation12 + $0x8] sm:$0xff] %v962
          %979 = vst [vmem:[#allocation12 + $0x10] sm:$0xff] %v963
          %980 = vst [vmem:[#allocation12 + $0x18] sm:$0xff] %v964
          %981 = vst [vmem:[#allocation12 + $0x20] sm:$0xff] %v965
          %982 = vst [vmem:[#allocation12 + $0x28] sm:$0xff] %v966
          %983 = vst [vmem:[#allocation12 + $0x30] sm:$0xff] %v967
          %984 = vst [vmem:[#allocation12 + $0x38] sm:$0xff] %v968
          %985 = vst [vmem:[#allocation12 + $0x40] sm:$0xff] %v969
          %986 = vst [vmem:[#allocation12 + $0x48] sm:$0xff] %v970
          %987 = vst [vmem:[#allocation12 + $0x50] sm:$0xff] %v971
          %988 = vst [vmem:[#allocation12 + $0x58] sm:$0xff] %v972
          %989 = vst [vmem:[#allocation12 + $0x60] sm:$0xff] %v973
          %990 = vst [vmem:[#allocation12 + $0x68] sm:$0xff] %v974
          %991 = vst [vmem:[#allocation12 + $0x70] sm:$0xff] %v975
          %992 = vst [vmem:[#allocation12 + $0x78] sm:$0xff] %v976
        $region76: #{gcn_forward_fused.1} parent=35 // pred_fallthru
          _
        // Predicated region
        $region77: #{gcn_forward_fused.1} parent=35 // pred_check
          %p993 = pneg %p156
        $region78: #{gcn_forward_fused.1} parent=35 // pred_check_branch
          %995 = sbr.rel (%p993) target = $region80
        $region79: #{gcn_forward_fused.1} parent=35 // pred_region
          %s996 = smul.u32 16, %s24
          %998 = vsyncadd [#allocation7], 0
          %s999 = smul.addr %s996, 8
          %s1000 = scalar_lea.hbm %s4, %s999
          %s1001 = sshll.u32 [#allocation12], 4
          %s1002 = int_to_ptr.vmem [resolvable:$true] %s1001
          %s1003 = sshll.u32 %s1000, 4
          %s1004 = int_to_ptr.hbm [resolvable:$true] %s1003
          %1009 = dma.vmem_to_hbm [thread:$0]  %s1002, 2048, %s1004, [#allocation7], 128, 128, 8
        $region80: #{gcn_forward_fused.1} parent=35 // pred_fallthru
          _
        // Predicated region
        $region81: #{gcn_forward_fused.1} parent=35 // pred_check
          %p1010 = pneg %p156
        $region82: #{gcn_forward_fused.1} parent=35 // pred_check_branch
          %1012 = sbr.rel (%p1010) target = $region84
        $region83: #{gcn_forward_fused.1} parent=35 // pred_region
          %1014 = dma.done [#allocation7], 2048
        $region84: #{gcn_forward_fused.1} parent=35 // pred_fallthru
          _
      $region36: #{gcn_forward_fused.1} parent=5 // pred_fallthru
        _
      %p1015 = scmp.le.s32.totalorder 2, %s13
      // Predicated region
      $region85: #{gcn_forward_fused.1} parent=5 // pred_check
        %p1016 = pneg %p1015
      $region86: #{gcn_forward_fused.1} parent=5 // pred_check_branch
        %1018 = sbr.rel (%p1016) target = $region88
      $region87: #{gcn_forward_fused.1} parent=5 // pred_region
        %s1019 = ssub.s32 %s13, 2
      $region88: #{gcn_forward_fused.1} parent=5 // pred_fallthru
        _
    $region6: #{gcn_forward_fused.1} parent=1 // loop_footer
      %s17 = sadd.s32 1, %s13
    $region7: #{gcn_forward_fused.1} parent=1 // loop_footer_branch
      %12 = sbr.rel target = $region3
    $region8: #{gcn_forward_fused.1} parent=1 // loop_exit
      _
    %1020 = vsyncpa [#allocation6], 1
    %s1021 = scalar_lea.sflag [#allocation6], 1
    %1022 = vsyncpa %s1021, 1
    %1023 = vsyncpa [#allocation9], 1
    %1024 = vsyncpa [#allocation7], 1
    %s1025 = scalar_lea.sflag [#allocation7], 1
    %1026 = vsyncpa %s1025, 1

</llo_original>
